<compile_context>
chip_gen: v7x
topology: tpu7x:2x2x1
jax: 0.10.0
libtpu: 0.0.40
codegen_flags: <defaults>
</compile_context>

<pallas_src>
import jax
import jax.numpy as jnp
from jax.experimental import pallas as pl
from jax.experimental.pallas import tpu as pltpu


BN_EPS = 1e-5
IN_FEATURES = 4
OUT_FEATURES = 10


def _longitudinal_kernel(x_ref, consts_ref, o_ref):
    x = x_ref[...].astype(jnp.float32)                     # (B, 4)
    w = consts_ref[0:IN_FEATURES, :].astype(jnp.float32)   # (4, 10)

    # Linear (bias omitted — it cancels under the batch-mean subtraction).
    # K = 4 unrolled broadcast-FMA on the VPU: avoids a padded MXU pass.
    y = x[:, 0:1] * w[0:1, :]                              # (B,1)*(1,10) -> (B,10)
    for k in range(1, IN_FEATURES):
        y = y + x[:, k:k + 1] * w[k:k + 1, :]

    # BatchNorm1d training-mode forward: batch mean, biased batch variance
    # (two-pass form for numerical stability).
    mean = jnp.mean(y, axis=0, keepdims=True)              # (1, 10)
    d = y - mean
    var = jnp.mean(d * d, axis=0, keepdims=True)           # (1, 10)
    inv_std = jax.lax.rsqrt(var + BN_EPS)

    gamma = consts_ref[IN_FEATURES:IN_FEATURES + 1, :].astype(jnp.float32)
    beta = consts_ref[IN_FEATURES + 1:IN_FEATURES + 2, :].astype(jnp.float32)

    # Fold normalize + affine into one FMA over the (B, 10) tile.
    scale = gamma * inv_std                                 # (1, 10)
    shift = beta - mean * scale                             # (1, 10)
    y_hat = y * scale + shift

    # ReLU
    o_ref[...] = jnp.maximum(y_hat, 0.0).astype(o_ref.dtype)


def pack_params(w_t, bias, gamma, beta):
    """Pack the fixed parameters into ONE (6, 10) operand.

    Call this once, outside the per-step hot path (W/gamma/beta are fixed
    module parameters), so the per-call kernel takes just (x, consts).

    w_t:   (4, 10)  nn.Linear weight, pre-transposed to (in, out)
    bias:  (10,) or (1, 10)  nn.Linear bias — accepted for API parity; it
           cancels exactly under training-mode BatchNorm, so it is dropped.
    gamma: (10,) or (1, 10)  BN weight
    beta:  (10,) or (1, 10)  BN bias
    """
    del bias  # algebraically cancelled by the batch-mean subtraction
    return jnp.concatenate(
        [
            jnp.asarray(w_t, jnp.float32).reshape(IN_FEATURES, OUT_FEATURES),
            jnp.asarray(gamma, jnp.float32).reshape(1, OUT_FEATURES),
            jnp.asarray(beta, jnp.float32).reshape(1, OUT_FEATURES),
        ],
        axis=0,
    )  # (6, 10)


@jax.jit
def longitudinal_forward(x, consts):
    """Forward pass of Longitudinal.

    x:      (B, 4)  float32
    consts: (6, 10) float32  — output of pack_params (rows 0-3 W^T, 4 gamma, 5 beta)
    """
    B = x.shape[0]
    vmem = pl.BlockSpec(memory_space=pltpu.MemorySpace.VMEM)
    return pl.pallas_call(
        _longitudinal_kernel,
        out_shape=jax.ShapeDtypeStruct((B, OUT_FEATURES), jnp.float32),
        in_specs=[vmem, vmem],
        out_specs=vmem,
    )(x, consts)


def _reference_forward(x, w_t, bias, gamma, beta):
    # Full reference INCLUDING the Linear bias, to verify it cancels.
    y = x @ w_t + bias
    mean = jnp.mean(y, axis=0, keepdims=True)
    var = jnp.mean((y - mean) ** 2, axis=0, keepdims=True)
    y_hat = (y - mean) * jax.lax.rsqrt(var + BN_EPS) * gamma + beta
    return jnp.maximum(y_hat, 0.0)


if __name__ == "__main__":
    key = jax.random.PRNGKey(0)
    k_x, k_w, k_b, k_g, k_be = jax.random.split(key, 5)

    B = 8

    x = jax.random.normal(k_x, (B, IN_FEATURES), dtype=jnp.float32)
    # nn.Linear weight is (out, in); pass its transpose (in, out).
    w = jax.random.uniform(
        k_w, (OUT_FEATURES, IN_FEATURES), minval=-0.5, maxval=0.5, dtype=jnp.float32
    )
    w_t = w.T                                                         # (4, 10)
    bias = jax.random.uniform(
        k_b, (1, OUT_FEATURES), minval=-0.5, maxval=0.5, dtype=jnp.float32
    )
    gamma = 1.0 + 0.1 * jax.random.normal(k_g, (1, OUT_FEATURES), dtype=jnp.float32)
    beta = 0.1 * jax.random.normal(k_be, (1, OUT_FEATURES), dtype=jnp.float32)

    # Parameter packing is done ONCE, outside the per-call path.
    consts = jax.block_until_ready(pack_params(w_t, bias, gamma, beta))

    out = longitudinal_forward(x, consts)
    out = jax.block_until_ready(out)

    ref = _reference_forward(x, w_t, bias, gamma, beta)
    assert out.shape == (B, OUT_FEATURES)
    assert jnp.allclose(out, ref, atol=1e-4, rtol=1e-4), "mismatch vs reference"

    print("KERNEL_OK")
</pallas_src>

<mosaic_0001>
module attributes {stable_mosaic.version = 11 : i64} {
  func.func @_longitudinal_kernel(%arg0: memref<8x4xf32, #tpu.memory_space<vmem>>, %arg1: memref<6x10xf32, #tpu.memory_space<vmem>>, %arg2: memref<8x10xf32, #tpu.memory_space<vmem>>) attributes {dimension_semantics = [], scalar_prefetch = 0 : i64, scratch_operands = 0 : i64, tpu.core_type = #tpu.core_type<tc>} {
    %c0 = arith.constant 0 : index
    %c0_0 = arith.constant 0 : index
    %0 = vector.load %arg0[%c0, %c0_0] : memref<8x4xf32, #tpu.memory_space<vmem>>, vector<8x4xf32>
    %c0_1 = arith.constant 0 : index
    %c0_2 = arith.constant 0 : index
    %1 = vector.load %arg1[%c0_1, %c0_2] : memref<6x10xf32, #tpu.memory_space<vmem>>, vector<4x10xf32>
    %2 = vector.extract_strided_slice %0 {offsets = [0, 0], sizes = [8, 1], strides = [1, 1]} : vector<8x4xf32> to vector<8x1xf32>
    %3 = vector.extract_strided_slice %1 {offsets = [0, 0], sizes = [1, 10], strides = [1, 1]} : vector<4x10xf32> to vector<1x10xf32>
    %4 = vector.broadcast %2 : vector<8x1xf32> to vector<8x10xf32>
    %5 = vector.broadcast %3 : vector<1x10xf32> to vector<8x10xf32>
    %6 = arith.mulf %4, %5 : vector<8x10xf32>
    %7 = vector.extract_strided_slice %0 {offsets = [0, 1], sizes = [8, 1], strides = [1, 1]} : vector<8x4xf32> to vector<8x1xf32>
    %8 = vector.extract_strided_slice %1 {offsets = [1, 0], sizes = [1, 10], strides = [1, 1]} : vector<4x10xf32> to vector<1x10xf32>
    %9 = vector.broadcast %7 : vector<8x1xf32> to vector<8x10xf32>
    %10 = vector.broadcast %8 : vector<1x10xf32> to vector<8x10xf32>
    %11 = arith.mulf %9, %10 : vector<8x10xf32>
    %12 = arith.addf %6, %11 : vector<8x10xf32>
    %13 = vector.extract_strided_slice %0 {offsets = [0, 2], sizes = [8, 1], strides = [1, 1]} : vector<8x4xf32> to vector<8x1xf32>
    %14 = vector.extract_strided_slice %1 {offsets = [2, 0], sizes = [1, 10], strides = [1, 1]} : vector<4x10xf32> to vector<1x10xf32>
    %15 = vector.broadcast %13 : vector<8x1xf32> to vector<8x10xf32>
    %16 = vector.broadcast %14 : vector<1x10xf32> to vector<8x10xf32>
    %17 = arith.mulf %15, %16 : vector<8x10xf32>
    %18 = arith.addf %12, %17 : vector<8x10xf32>
    %19 = vector.extract_strided_slice %0 {offsets = [0, 3], sizes = [8, 1], strides = [1, 1]} : vector<8x4xf32> to vector<8x1xf32>
    %20 = vector.extract_strided_slice %1 {offsets = [3, 0], sizes = [1, 10], strides = [1, 1]} : vector<4x10xf32> to vector<1x10xf32>
    %21 = vector.broadcast %19 : vector<8x1xf32> to vector<8x10xf32>
    %22 = vector.broadcast %20 : vector<1x10xf32> to vector<8x10xf32>
    %23 = arith.mulf %21, %22 : vector<8x10xf32>
    %24 = arith.addf %18, %23 : vector<8x10xf32>
    %cst = arith.constant dense<0.000000e+00> : vector<10xf32>
    %25 = vector.multi_reduction <add>, %24, %cst [0] : vector<8x10xf32> to vector<10xf32>
    %26 = vector.shape_cast %25 : vector<10xf32> to vector<1x10xf32>
    %cst_3 = arith.constant 8.000000e+00 : f32
    %27 = vector.broadcast %cst_3 : f32 to vector<1x10xf32>
    %28 = arith.divf %26, %27 : vector<1x10xf32>
    %29 = vector.broadcast %28 : vector<1x10xf32> to vector<8x10xf32>
    %30 = arith.subf %24, %29 : vector<8x10xf32>
    %31 = arith.mulf %30, %30 : vector<8x10xf32>
    %cst_4 = arith.constant dense<0.000000e+00> : vector<10xf32>
    %32 = vector.multi_reduction <add>, %31, %cst_4 [0] : vector<8x10xf32> to vector<10xf32>
    %33 = vector.shape_cast %32 : vector<10xf32> to vector<1x10xf32>
    %cst_5 = arith.constant 8.000000e+00 : f32
    %34 = vector.broadcast %cst_5 : f32 to vector<1x10xf32>
    %35 = arith.divf %33, %34 : vector<1x10xf32>
    %cst_6 = arith.constant 9.99999974E-6 : f32
    %36 = vector.broadcast %cst_6 : f32 to vector<1x10xf32>
    %37 = arith.addf %35, %36 : vector<1x10xf32>
    %38 = math.rsqrt %37 : vector<1x10xf32>
    %c4 = arith.constant 4 : index
    %c0_7 = arith.constant 0 : index
    %39 = vector.load %arg1[%c4, %c0_7] : memref<6x10xf32, #tpu.memory_space<vmem>>, vector<1x10xf32>
    %c5 = arith.constant 5 : index
    %c0_8 = arith.constant 0 : index
    %40 = vector.load %arg1[%c5, %c0_8] : memref<6x10xf32, #tpu.memory_space<vmem>>, vector<1x10xf32>
    %41 = arith.mulf %39, %38 : vector<1x10xf32>
    %42 = arith.mulf %28, %41 : vector<1x10xf32>
    %43 = arith.subf %40, %42 : vector<1x10xf32>
    %44 = vector.broadcast %41 : vector<1x10xf32> to vector<8x10xf32>
    %45 = arith.mulf %24, %44 : vector<8x10xf32>
    %46 = vector.broadcast %43 : vector<1x10xf32> to vector<8x10xf32>
    %47 = arith.addf %45, %46 : vector<8x10xf32>
    %cst_9 = arith.constant 0.000000e+00 : f32
    %48 = vector.broadcast %cst_9 : f32 to vector<8x10xf32>
    %49 = arith.maximumf %47, %48 : vector<8x10xf32>
    %c0_10 = arith.constant 0 : index
    %c0_11 = arith.constant 0 : index
    %50 = vector.load %arg2[%c0_10, %c0_11] : memref<8x10xf32, #tpu.memory_space<vmem>>, vector<8x10xf32>
    tpu.vector_store %arg2[%c0_10, %c0_11], %49 {strides = array<i32>} : memref<8x10xf32, #tpu.memory_space<vmem>>, vector<8x10xf32>,
    return
  }
}

</mosaic_0001>

<llo_original>
// kernel: longitudinal_forward.1
$region0: #{longitudinal_forward.1}
  #allocation0 [shape = 'u32[]', space=smem, size = 0x4, offset = 0x4, fixed_abs, tag = 'smem constant byte address 0x4 - core index']
  #allocation1 [shape = 'u32[144,128]{1,0:T(1,128)}', space=vmem, size = 0x12000, scoped, tag = 'internal scratch']
  %s0 = inlined_call_operand.vmem [shape: f32[8,4], index: 0, kind: input, shape index: {}]
  %s1 = inlined_call_operand.vmem [shape: f32[6,10], index: 1, kind: input, shape index: {}]
  %s2 = inlined_call_operand.hbm [shape: f32[8,10], index: 2, kind: output, shape index: {}]
  %s3 = sld [smem:[#allocation0]]
  $region18: #{longitudinal_forward.1} parent=0
    _
  %s5 = ssub.s32 1, %s3
  %s6 = scalar_select 0, %s5, %s3
  $region1: #{longitudinal_forward.1} parent=0
    #allocation2 [shape = 'u8[4096]{0}', space=vmem, size = 0x1000, scoped, tag = 'output window, operand 0, single buffered']
    #allocation3 [shape = 's32[1]{0}', space=sflag, size = 0x4, scoped, tag = 'scoped memory for longitudinal_forward.1']
    %7 = vsyncpa [#allocation3], 0
    // Predicated region
    $region2: #{longitudinal_forward.1} parent=1 // pred_check
      _
    $region3: #{longitudinal_forward.1} parent=1 // pred_check_branch
      %9 = sbr.rel (0) target = $region5
    $region4: #{longitudinal_forward.1} parent=1 // pred_region
      _
    $region5: #{longitudinal_forward.1} parent=1 // pred_fallthru
      _
    // Predicated region
    $region6: #{longitudinal_forward.1} parent=1 // pred_check
      _
    $region7: #{longitudinal_forward.1} parent=1 // pred_check_branch
      %11 = sbr.rel (0) target = $region9
    $region8: #{longitudinal_forward.1} parent=1 // pred_region
      _
    $region9: #{longitudinal_forward.1} parent=1 // pred_fallthru
      _
    %v12 = vld [vmem:[%s0] sm:$0xff]
    %v13 = vld [vmem:[%s1] sm:$0xf]
    %15 = vset.pattern.permute.xlu0 0
    %16 = vperm.xlu0 %15, %v12
    %v17 = vpop.permute.xlu0 %16
    %v19 = vlaneseq
    %v20 = vshrl.u32 %v19, 7
    %v21 = vsub.s32 0, %v20
    %v22 = vrot.slane %v13, %v21
    %v23 = vmul.f32 %v17, %v22
    %24 = vset.pattern.permute.xlu0 1
    %25 = vperm.xlu0 %24, %v12
    %v26 = vpop.permute.xlu0 %25
    %v28 = vlaneseq
    %v29 = vshrl.u32 %v28, 7
    %v30 = vsub.s32 1, %v29
    %v31 = vrot.slane %v13, %v30
    %v32 = vmul.f32 %v26, %v31
    %v33 = vadd.f32 %v23, %v32
    %34 = vset.pattern.permute.xlu0 2
    %35 = vperm.xlu0 %34, %v12
    %v36 = vpop.permute.xlu0 %35
    %v38 = vlaneseq
    %v39 = vshrl.u32 %v38, 7
    %v40 = vsub.s32 2, %v39
    %v41 = vrot.slane %v13, %v40
    %v42 = vmul.f32 %v36, %v41
    %v43 = vadd.f32 %v33, %v42
    %44 = vset.pattern.permute.xlu0 3
    %45 = vperm.xlu0 %44, %v12
    %v46 = vpop.permute.xlu0 %45
    %v48 = vlaneseq
    %v49 = vshrl.u32 %v48, 7
    %v50 = vsub.s32 3, %v49
    %v51 = vrot.slane %v13, %v50
    %v52 = vmul.f32 %v46, %v51
    %v53 = vadd.f32 %v43, %v52
    %vm54 = vcmask 80896
    %v55 = vsel %vm54, %v53, 0.0
    %v56 = vrot.slane %v55, 4
    %v57 = vadd.f32 %v55, %v56
    %v58 = vrot.slane %v57, 2
    %v59 = vadd.f32 %v57, %v58
    %v60 = vrot.slane %v59, 1
    %v61 = vadd.f32 %v59, %v60
    %v62 = vrcp.pop 8.0
    %v63 = vmul.f32 %v61, %v62
    %v64 = vsub.f32 %v53, %v63
    %v65 = vmul.f32 %v64, %v64
    %v66 = vsel %vm54, %v65, 0.0
    %v67 = vrot.slane %v66, 4
    %v68 = vadd.f32 %v66, %v67
    %v69 = vrot.slane %v68, 2
    %v70 = vadd.f32 %v68, %v69
    %v71 = vrot.slane %v70, 1
    %v72 = vadd.f32 %v70, %v71
    %v73 = vmul.f32 %v72, %v62
    %v74 = vadd.f32 %v73, 1e-05
    %v75 = vrsqrt.pop %v74
    %v76 = vld [vmem:[%s1 + $0x4] sm:$0x1]
    %v77 = vld [vmem:[%s1 + $0x5] sm:$0x1]
    %v78 = vmul.f32 %v76, %v75
    %v79 = vmul.f32 %v63, %v78
    %v80 = vsub.f32 %v77, %v79
    %v81 = vlaneseq
    %v82 = vshrl.u32 %v81, 7
    %v83 = vsub.s32 0, %v82
    %v84 = vrot.slane %v78, %v83
    %v85 = vmul.f32 %v53, %v84
    %v86 = vlaneseq
    %v87 = vshrl.u32 %v86, 7
    %v88 = vsub.s32 0, %v87
    %v89 = vrot.slane %v80, %v88
    %v90 = vadd.f32 %v85, %v89
    %v91 = vmax.f32 %v90, 0.0
    %92 = vst.msk [vmem:[#allocation2] sm:$0xff] %vm54, %v91
    // Predicated region
    $region10: #{longitudinal_forward.1} parent=1 // pred_check
      _
    $region11: #{longitudinal_forward.1} parent=1 // pred_check_branch
      %94 = sbr.rel (0) target = $region13
    $region12: #{longitudinal_forward.1} parent=1 // pred_region
      %s96 = ssub.s32 128, 128
      %97 = vsyncadd [#allocation3], %s96
      %s99 = sshll.u32 [#allocation2], 4
      %s100 = int_to_ptr.vmem [resolvable:$true] %s99
      %102 = dma.vmem_to_hbm [thread:$0]  %s100, 128, %s2, [#allocation3]
    $region13: #{longitudinal_forward.1} parent=1 // pred_fallthru
      _
    // Predicated region
    $region14: #{longitudinal_forward.1} parent=1 // pred_check
      _
    $region15: #{longitudinal_forward.1} parent=1 // pred_check_branch
      %104 = sbr.rel (0) target = $region17
    $region16: #{longitudinal_forward.1} parent=1 // pred_region
      %105 = dma.done [#allocation3], 128
    $region17: #{longitudinal_forward.1} parent=1 // pred_fallthru
      _
    %106 = vsyncpa [#allocation3], 1

</llo_original>
